<compile_context>
chip_gen: v5e
topology: v5e:2x2
jax: 0.10.0
libtpu: 0.0.40
codegen_flags: <defaults>
</compile_context>

<pallas_src>
import functools
import math

import jax
import jax.numpy as jnp
from jax.experimental import pallas as pl
from jax.experimental.pallas import tpu as pltpu


def _round_up(x, m):
    return (x + m - 1) // m * m


@functools.lru_cache(maxsize=1)
def _tpu_generation():
    """Best-effort (physical_vmem_bytes, dual_tensorcore, mxu_granule)."""
    kind = ""
    try:
        kind = (jax.devices()[0].device_kind or "").lower()
    except Exception:
        pass
    phys = None
    try:
        info = pltpu.get_tpu_info()
        for attr in ("vmem_capacity_bytes", "vmem_bytes", "vmem_size_bytes"):
            val = getattr(info, attr, None)
            if val:
                phys = int(val)
                break
    except Exception:
        phys = None
    dual_tc = ("7" in kind) or (phys is not None and phys <= (64 << 20))
    if phys is None:
        phys = (64 << 20) if dual_tc else (128 << 20)
    # v2-v5 use 128x128 MXUs; v6e/v7x use 256x256 (256-granule tiles).
    granule = 128 if any(g in kind for g in ("v2", "v3", "v4", "v5")) else 256
    return phys, dual_tc, granule


def _ffn_kernel_resident(x_ref, w1_ref, b1_ref, w2_ref, b2_ref, o_ref, *,
                         mm_dtype, h_dtype):
    """Whole 4H dimension resident: no accumulator, store straight to o_ref."""
    x = x_ref[...]
    w1 = w1_ref[...]
    if mm_dtype is not None:
        x = x.astype(mm_dtype)
        w1 = w1.astype(mm_dtype)
    h = jnp.dot(x, w1, preferred_element_type=jnp.float32)
    h = h + b1_ref[...].astype(jnp.float32)
    # exact GELU: x * 0.5 * (1 + erf(x / sqrt(2)))
    h = h * 0.5 * (1.0 + jax.lax.erf(h * (1.0 / math.sqrt(2.0))))
    h = h.astype(h_dtype)
    w2 = w2_ref[...]
    if w2.dtype != h_dtype:
        w2 = w2.astype(h_dtype)
    out = jnp.dot(h, w2, preferred_element_type=jnp.float32)
    o_ref[...] = (out + b2_ref[...].astype(jnp.float32)).astype(o_ref.dtype)


def _ffn_kernel_ktiled(x_ref, w1_ref, b1_ref, w2_ref, b2_ref, o_ref, acc_ref, *,
                       mm_dtype, h_dtype):
    """4H dimension tiled along the inner grid axis with an f32 accumulator."""
    k = pl.program_id(1)

    @pl.when(k == 0)
    def _init():
        acc_ref[...] = jnp.zeros_like(acc_ref)

    x = x_ref[...]
    w1 = w1_ref[...]
    if mm_dtype is not None:
        x = x.astype(mm_dtype)
        w1 = w1.astype(mm_dtype)
    h = jnp.dot(x, w1, preferred_element_type=jnp.float32)
    h = h + b1_ref[...].astype(jnp.float32)
    h = h * 0.5 * (1.0 + jax.lax.erf(h * (1.0 / math.sqrt(2.0))))
    h = h.astype(h_dtype)
    w2 = w2_ref[...]
    if w2.dtype != h_dtype:
        w2 = w2.astype(h_dtype)
    acc_ref[...] += jnp.dot(h, w2, preferred_element_type=jnp.float32)

    @pl.when(k == pl.num_programs(1) - 1)
    def _finalize():
        o_ref[...] = (acc_ref[...] + b2_ref[...].astype(jnp.float32)).astype(o_ref.dtype)


def position_wise_feed_forward(x, w1, b1, w2, b2, *, tm=1024, tn=None,
                               compute_dtype=None):
    """Fused fc1 -> exact erf-GELU -> fc2.

    x: [B, S, H]; w1: [H, 4H]; b1: [4H]; w2: [4H, H]; b2: [H].

    compute_dtype: optional MXU input dtype for BOTH matmuls (e.g.
    jnp.bfloat16 for an f32 model when the accuracy budget allows). When None,
    matmuls run on the native dtypes; the GELU output is downcast to bf16 for
    the second matmul only when w2 itself is bf16 (intentional, documented
    divergence from an exact-f32 reference in that case).
    """
    B, S, H = x.shape
    Hin, H4 = w1.shape
    assert Hin == H and w2.shape == (H4, H) and b1.shape == (H4,) and b2.shape == (H,)
    M = B * S

    x_isz = jnp.dtype(x.dtype).itemsize
    o_isz = x_isz
    w1_isz = jnp.dtype(w1.dtype).itemsize
    w2_isz = jnp.dtype(w2.dtype).itemsize
    b1_isz = jnp.dtype(b1.dtype).itemsize
    b2_isz = jnp.dtype(b2.dtype).itemsize

    mm_dtype = jnp.dtype(compute_dtype) if compute_dtype is not None else None
    if mm_dtype is not None:
        h_dtype = mm_dtype
    elif jnp.dtype(w2.dtype) == jnp.dtype(jnp.bfloat16):
        h_dtype = jnp.dtype(jnp.bfloat16)
    else:
        h_dtype = jnp.dtype(jnp.float32)

    # --- generation-aware VMEM budget / limit --------------------------------
    phys_vmem, dual_tc, granule = _tpu_generation()
    if phys_vmem <= (64 << 20):
        # v7x-class: 64 MiB physical; leave headroom for Mosaic internal scratch.
        budget, limit_cap = 40 << 20, 56 << 20
    else:
        # v5e / v6e: 128 MiB physical; use most of it so weights stay resident.
        budget, limit_cap = 100 << 20, 112 << 20

    # --- lane-dense dims ------------------------------------------------------
    Hp = _round_up(H, 128)
    H4_lane = _round_up(H4, 128)

    # --- row tile: maximize first, keep MXU-granule alignment ----------------
    tm = max(8, min(int(tm), _round_up(M, 8)))
    if tm >= granule and tm % granule and M >= _round_up(tm, granule):
        tm = _round_up(tm, granule)
    # Dual-TC parts: make sure the "parallel" row axis has >= 2 steps so both
    # TensorCores get work (only matters for small/medium M).
    if dual_tc and M > granule and _round_up(M, tm) // tm < 2:
        tm = max(granule, min(tm, _round_up(-(-M // 2), granule)))

    def _vmem_est(tm_, tn_, single):
        w_buf = 1 if single else 2
        return (2 * tm_ * Hp * (x_isz + o_isz)                       # x/out tiles (dbl-buffered)
                + w_buf * (Hp * tn_ * w1_isz + tn_ * Hp * w2_isz + 8 * tn_ * b1_isz)
                + 8 * Hp * b2_isz                                    # b2 (grid-constant)
                + 2 * tm_ * tn_ * 4                                  # live f32 GELU intermediates
                + tm_ * Hp * 4                                       # second-matmul result temp
                + (0 if single else tm_ * Hp * 4))                   # f32 accumulator scratch

    # --- intermediate (4H) tiling: resident fast path first -------------------
    tn_cap = tn
    force_split = (tn_cap is not None
                   and _round_up(min(int(tn_cap), H4_lane), 128) < H4_lane)

    if not force_split and _vmem_est(tm, H4_lane, True) <= budget:
        tn, n_k = H4_lane, 1
    else:
        tn = (_round_up(min(int(tn_cap), H4_lane), 128)
              if tn_cap is not None else H4_lane)
        tn_gran = granule if (H4_lane % granule == 0 and H4_lane > granule) else 128
        while _vmem_est(tm, tn, False) > budget and tn > tn_gran:
            tn = max(tn_gran, _round_up(tn // 2, tn_gran))
        tm_gran = granule if tm > granule else 8
        while _vmem_est(tm, tn, False) > budget and tm > tm_gran:
            tm = max(tm_gran, _round_up(tm // 2, tm_gran))
        if not force_split and _vmem_est(tm, H4_lane, True) <= budget:
            tn, n_k = H4_lane, 1          # smaller tm made resident weights fit again
        else:
            n_k = _round_up(H4, tn) // tn

    H4p = H4_lane if n_k == 1 else _round_up(H4, tn)
    Mp = _round_up(M, tm)
    n_row = Mp // tm

    need = _vmem_est(tm, tn, n_k == 1)
    vmem_limit = int(min(max(need + max(need // 4, 4 << 20), 16 << 20), limit_cap))

    # --- zero-pad operands (exact: zero rows/cols + gelu(0) == 0) -------------
    # NOTE: for repeated calls the weight/bias padding below should be hoisted
    # to parameter-load time; it is skipped entirely for 128-aligned sizes.
    x2d = x.reshape(M, H)
    if Mp != M or Hp != H:
        x2d = jnp.pad(x2d, ((0, Mp - M), (0, Hp - H)))
    w1p = w1 if (Hp == H and H4p == H4) else jnp.pad(w1, ((0, Hp - H), (0, H4p - H4)))
    b1p = (b1 if H4p == H4 else jnp.pad(b1, (0, H4p - H4))).reshape(1, H4p)
    w2p = w2 if (Hp == H and H4p == H4) else jnp.pad(w2, ((0, H4p - H4), (0, Hp - H)))
    b2p = (b2 if Hp == H else jnp.pad(b2, (0, Hp - H))).reshape(1, Hp)

    # --- cost estimate (per-operand itemsize; weights re-streamed per row tile
    # only on the k-tiled path; grid-constant blocks are fetched once) ---------
    w_passes = 1 if n_k == 1 else n_row
    cost = pl.CostEstimate(
        flops=int(4.0 * Mp * Hp * H4p),
        transcendentals=int(Mp * H4p),
        bytes_accessed=int(x2d.size * x_isz + Mp * Hp * o_isz + b2p.size * b2_isz
                           + w_passes * (w1p.size * w1_isz + w2p.size * w2_isz
                                         + b1p.size * b1_isz)),
    )

    const = dict(pipeline_mode=pl.Buffered(1))   # grid-constant blocks: one buffer

    if n_k == 1:
        kernel = functools.partial(_ffn_kernel_resident,
                                   mm_dtype=mm_dtype, h_dtype=h_dtype)
        grid_spec = pltpu.PrefetchScalarGridSpec(
            num_scalar_prefetch=0,
            grid=(n_row,),
            in_specs=[
                pl.BlockSpec((tm, Hp), lambda i: (i, 0)),                # x rows tile
                pl.BlockSpec((Hp, H4p), lambda i: (0, 0), **const),      # W1 (resident)
                pl.BlockSpec((1, H4p), lambda i: (0, 0), **const),       # b1
                pl.BlockSpec((H4p, Hp), lambda i: (0, 0), **const),      # W2 (resident)
                pl.BlockSpec((1, Hp), lambda i: (0, 0), **const),        # b2
            ],
            out_specs=pl.BlockSpec((tm, Hp), lambda i: (i, 0)),
        )
        dim_sem = ("parallel",)
    else:
        kernel = functools.partial(_ffn_kernel_ktiled,
                                   mm_dtype=mm_dtype, h_dtype=h_dtype)
        grid_spec = pltpu.PrefetchScalarGridSpec(
            num_scalar_prefetch=0,
            grid=(n_row, n_k),
            in_specs=[
                pl.BlockSpec((tm, Hp), lambda i, k: (i, 0)),             # x rows tile
                pl.BlockSpec((Hp, tn), lambda i, k: (0, k)),             # W1 column slice
                pl.BlockSpec((1, tn), lambda i, k: (0, k)),              # b1 slice
                pl.BlockSpec((tn, Hp), lambda i, k: (k, 0)),             # W2 row slice
                pl.BlockSpec((1, Hp), lambda i, k: (0, 0), **const),     # b2 (constant)
            ],
            out_specs=pl.BlockSpec((tm, Hp), lambda i, k: (i, 0)),
            scratch_shapes=[pltpu.VMEM((tm, Hp), jnp.float32)],
        )
        dim_sem = ("parallel", "arbitrary")

    out2d = pl.pallas_call(
        kernel,
        out_shape=jax.ShapeDtypeStruct((Mp, Hp), x.dtype),
        grid_spec=grid_spec,
        compiler_params=pltpu.CompilerParams(
            dimension_semantics=dim_sem,
            vmem_limit_bytes=vmem_limit,
        ),
        cost_estimate=cost,
    )(x2d, w1p, b1p, w2p, b2p)

    if Mp != M or Hp != H:
        out2d = out2d[:M, :H]
    return out2d.reshape(B, S, H)


def _reference(x, w1, b1, w2, b2):
    B, S, H = x.shape
    h = x.reshape(-1, H) @ w1 + b1
    h = h * 0.5 * (1.0 + jax.lax.erf(h / math.sqrt(2.0)))
    return (h @ w2 + b2).reshape(B, S, H)


if __name__ == "__main__":
    # Small shapes consistent with the module: hidden_size=32 -> intermediate 128.
    H = 32
    H4 = 4 * H

    key = jax.random.PRNGKey(0)
    kx, kw1, kb1, kw2, kb2, kx2, kx3, kw3 = jax.random.split(key, 8)

    w1 = jax.random.normal(kw1, (H, H4), dtype=jnp.float32) * 0.02
    b1 = jax.random.normal(kb1, (H4,), dtype=jnp.float32) * 0.02
    w2 = jax.random.normal(kw2, (H4, H), dtype=jnp.float32) * 0.02
    b2 = jax.random.normal(kb2, (H,), dtype=jnp.float32) * 0.02

    # Case 1: nominal shape (B=2, S=8) -> resident-weight fast path (n_k == 1).
    x = jax.random.normal(kx, (2, 8, H), dtype=jnp.float32)
    out = jax.block_until_ready(position_wise_feed_forward(x, w1, b1, w2, b2))
    ref = _reference(x, w1, b1, w2, b2)
    assert jnp.allclose(out, ref, atol=1e-5, rtol=1e-5), "mismatch vs reference (case 1)"

    # Case 2: row count not a multiple of 8 -> exercises the M padding path.
    x2 = jax.random.normal(kx2, (2, 7, H), dtype=jnp.float32)
    out2 = jax.block_until_ready(position_wise_feed_forward(x2, w1, b1, w2, b2))
    ref2 = _reference(x2, w1, b1, w2, b2)
    assert jnp.allclose(out2, ref2, atol=1e-5, rtol=1e-5), "mismatch vs reference (case 2)"

    # Case 3: force the k-tiled accumulator fallback (tn < 4H) at hidden=64.
    H3, H34 = 64, 4 * 64
    kk = jax.random.split(kw3, 4)
    w1c = jax.random.normal(kk[0], (H3, H34), dtype=jnp.float32) * 0.02
    b1c = jax.random.normal(kk[1], (H34,), dtype=jnp.float32) * 0.02
    w2c = jax.random.normal(kk[2], (H34, H3), dtype=jnp.float32) * 0.02
    b2c = jax.random.normal(kk[3], (H3,), dtype=jnp.float32) * 0.02
    x3 = jax.random.normal(kx3, (2, 24, H3), dtype=jnp.float32)
    out3 = jax.block_until_ready(
        position_wise_feed_forward(x3, w1c, b1c, w2c, b2c, tn=128))
    ref3 = _reference(x3, w1c, b1c, w2c, b2c)
    assert jnp.allclose(out3, ref3, atol=1e-5, rtol=1e-5), "mismatch vs reference (case 3)"

    print("KERNEL_OK")
</pallas_src>

<mosaic_0001>
module attributes {stable_mosaic.version = 11 : i64} {
  func.func @_ffn_kernel_resident(%arg0: i32, %arg1: memref<16x128xf32, #tpu.memory_space<vmem>>, %arg2: memref<128x128xf32, #tpu.memory_space<vmem>>, %arg3: memref<1x128xf32, #tpu.memory_space<vmem>>, %arg4: memref<128x128xf32, #tpu.memory_space<vmem>>, %arg5: memref<1x128xf32, #tpu.memory_space<vmem>>, %arg6: memref<16x128xf32, #tpu.memory_space<vmem>>) attributes {dimension_semantics = [#tpu.dimension_semantics<parallel>], iteration_bounds = array<i64: 1>, scalar_prefetch = 0 : i64, scratch_operands = 0 : i64, tpu.core_type = #tpu.core_type<tc>, window_params = [{transform_indices = @transform_0, window_bounds = array<i64: 16, 128>}, {pipeline_mode = #tpu.pipeline_mode<synchronous>, transform_indices = @transform_1, window_bounds = array<i64: 128, 128>}, {pipeline_mode = #tpu.pipeline_mode<synchronous>, transform_indices = @transform_2, window_bounds = array<i64: 1, 128>}, {pipeline_mode = #tpu.pipeline_mode<synchronous>, transform_indices = @transform_3, window_bounds = array<i64: 128, 128>}, {pipeline_mode = #tpu.pipeline_mode<synchronous>, transform_indices = @transform_4, window_bounds = array<i64: 1, 128>}, {transform_indices = @transform_5, window_bounds = array<i64: 16, 128>}]} {
    %c0 = arith.constant 0 : index
    %c0_0 = arith.constant 0 : index
    %0 = vector.load %arg1[%c0, %c0_0] : memref<16x128xf32, #tpu.memory_space<vmem>>, vector<16x128xf32>
    %c0_1 = arith.constant 0 : index
    %c0_2 = arith.constant 0 : index
    %1 = vector.load %arg2[%c0_1, %c0_2] : memref<128x128xf32, #tpu.memory_space<vmem>>, vector<128x128xf32>
    %cst = arith.constant dense<0.000000e+00> : vector<16x128xf32>
    %2 = tpu.matmul %0, %1, %cst {dimension_numbers = #tpu.dot_dimension_numbers<[1], [0], [0], [1], [0, 0, 1, 1], [], []>} : vector<16x128xf32>, vector<128x128xf32>, vector<16x128xf32> -> vector<16x128xf32>
    %c0_3 = arith.constant 0 : index
    %c0_4 = arith.constant 0 : index
    %3 = vector.load %arg3[%c0_3, %c0_4] : memref<1x128xf32, #tpu.memory_space<vmem>>, vector<1x128xf32>
    %4 = vector.broadcast %3 : vector<1x128xf32> to vector<16x128xf32>
    %5 = arith.addf %2, %4 : vector<16x128xf32>
    %cst_5 = arith.constant 5.000000e-01 : f32
    %6 = vector.broadcast %cst_5 : f32 to vector<16x128xf32>
    %7 = arith.mulf %5, %6 : vector<16x128xf32>
    %cst_6 = arith.constant 0.707106769 : f32
    %8 = vector.broadcast %cst_6 : f32 to vector<16x128xf32>
    %9 = arith.mulf %5, %8 : vector<16x128xf32>
    %10 = math.erf %9 : vector<16x128xf32>
    %cst_7 = arith.constant 1.000000e+00 : f32
    %11 = vector.broadcast %cst_7 : f32 to vector<16x128xf32>
    %12 = arith.addf %11, %10 : vector<16x128xf32>
    %13 = arith.mulf %7, %12 : vector<16x128xf32>
    %c0_8 = arith.constant 0 : index
    %c0_9 = arith.constant 0 : index
    %14 = vector.load %arg4[%c0_8, %c0_9] : memref<128x128xf32, #tpu.memory_space<vmem>>, vector<128x128xf32>
    %cst_10 = arith.constant dense<0.000000e+00> : vector<16x128xf32>
    %15 = tpu.matmul %13, %14, %cst_10 {dimension_numbers = #tpu.dot_dimension_numbers<[1], [0], [0], [1], [0, 0, 1, 1], [], []>} : vector<16x128xf32>, vector<128x128xf32>, vector<16x128xf32> -> vector<16x128xf32>
    %c0_11 = arith.constant 0 : index
    %c0_12 = arith.constant 0 : index
    %16 = vector.load %arg5[%c0_11, %c0_12] : memref<1x128xf32, #tpu.memory_space<vmem>>, vector<1x128xf32>
    %17 = vector.broadcast %16 : vector<1x128xf32> to vector<16x128xf32>
    %18 = arith.addf %15, %17 : vector<16x128xf32>
    %c0_13 = arith.constant 0 : index
    %c0_14 = arith.constant 0 : index
    %19 = vector.load %arg6[%c0_13, %c0_14] : memref<16x128xf32, #tpu.memory_space<vmem>>, vector<16x128xf32>
    tpu.vector_store %arg6[%c0_13, %c0_14], %18 {strides = array<i32>} : memref<16x128xf32, #tpu.memory_space<vmem>>, vector<16x128xf32>,
    return
  }
  func.func @transform_0(%arg0: i32) -> (i32, i32) {
    %c0_i32 = arith.constant 0 : i32
    %c0_i32_0 = arith.constant 0 : i32
    return %arg0, %c0_i32 : i32, i32
  }
  func.func @transform_1(%arg0: i32) -> (i32, i32) {
    %c0_i32 = arith.constant 0 : i32
    %c0_i32_0 = arith.constant 0 : i32
    %c0_i32_1 = arith.constant 0 : i32
    return %c0_i32, %c0_i32_0 : i32, i32
  }
  func.func @transform_2(%arg0: i32) -> (i32, i32) {
    %c0_i32 = arith.constant 0 : i32
    %c0_i32_0 = arith.constant 0 : i32
    %c0_i32_1 = arith.constant 0 : i32
    return %c0_i32, %c0_i32_0 : i32, i32
  }
  func.func @transform_3(%arg0: i32) -> (i32, i32) {
    %c0_i32 = arith.constant 0 : i32
    %c0_i32_0 = arith.constant 0 : i32
    %c0_i32_1 = arith.constant 0 : i32
    return %c0_i32, %c0_i32_0 : i32, i32
  }
  func.func @transform_4(%arg0: i32) -> (i32, i32) {
    %c0_i32 = arith.constant 0 : i32
    %c0_i32_0 = arith.constant 0 : i32
    %c0_i32_1 = arith.constant 0 : i32
    return %c0_i32, %c0_i32_0 : i32, i32
  }
  func.func @transform_5(%arg0: i32) -> (i32, i32) {
    %c0_i32 = arith.constant 0 : i32
    %c0_i32_0 = arith.constant 0 : i32
    return %arg0, %c0_i32 : i32, i32
  }
}

</mosaic_0001>

<llo_original>
// kernel: tpu_custom_call.1
$region0: #{tpu_custom_call.1}
  #allocation0 [shape = 'u32[]', space=smem, size = 0x4, offset = 0x4, fixed_abs, tag = 'smem constant byte address 0x4 - core index']
  #allocation1 [shape = 'u32[72,128]{1,0:T(1,128)}', space=vmem, size = 0x9000, scoped, tag = 'internal scratch']
  %s0 = inlined_call_operand.hbm [shape: f32[16,128], index: 0, kind: input, shape index: {}]
  %s1 = inlined_call_operand.hbm [shape: f32[128,128], index: 1, kind: input, shape index: {}]
  %s2 = inlined_call_operand.vmem [shape: f32[1,128], index: 2, kind: input, shape index: {}]
  %s3 = inlined_call_operand.hbm [shape: f32[128,128], index: 3, kind: input, shape index: {}]
  %s4 = inlined_call_operand.vmem [shape: f32[1,128], index: 4, kind: input, shape index: {}]
  %s5 = inlined_call_operand.hbm [shape: f32[16,128], index: 5, kind: output, shape index: {}]
  %s6 = sld [smem:[#allocation0]]
  $region42: #{tpu_custom_call.1} parent=0
    _
  %s8 = ssub.s32 1, %s6
  %s9 = scalar_select 0, %s8, %s6
  $region1: #{tpu_custom_call.1} parent=0
    #allocation2 [shape = 'u8[8192]{0}', space=vmem, size = 0x2000, scoped, tag = 'input window, operand 0, single buffered']
    #allocation3 [shape = 's32[1]{0}', space=sflag, size = 0x4, scoped, tag = 'scoped memory for tpu_custom_call.1']
    #allocation4 [shape = 's32[1]{0}', space=sflag, size = 0x4, scoped, tag = 'scoped memory for tpu_custom_call.1']
    #allocation5 [shape = 'u8[65536]{0}', space=vmem, size = 0x10000, scoped, tag = 'input window, operand 1, single buffered']
    #allocation6 [shape = 's32[1]{0}', space=sflag, size = 0x4, scoped, tag = 'scoped memory for tpu_custom_call.1']
    #allocation7 [shape = 'u8[65536]{0}', space=vmem, size = 0x10000, scoped, tag = 'input window, operand 3, single buffered']
    #allocation8 [shape = 'u8[8192]{0}', space=vmem, size = 0x2000, scoped, tag = 'output window, operand 0, single buffered']
    %10 = vsyncpa [#allocation3], 0
    %11 = vsyncpa [#allocation6], 0
    %12 = vsyncpa [#allocation4], 0
    // Predicated region
    $region2: #{tpu_custom_call.1} parent=1 // pred_check
      _
    $region3: #{tpu_custom_call.1} parent=1 // pred_check_branch
      %14 = sbr.rel (0) target = $region5
    $region4: #{tpu_custom_call.1} parent=1 // pred_region
      %16 = vsyncadd [#allocation3], 0
      %s17 = sshll.u32 %s0, 4
      %s18 = int_to_ptr.hbm [resolvable:$true] %s17
      %s19 = sshll.u32 [#allocation2], 4
      %s20 = int_to_ptr.vmem [resolvable:$true] %s19
      %25 = dma.hbm_to_vmem [thread:$0]  %s18, 256, %s20, [#allocation3], 128, 128, 8
    $region5: #{tpu_custom_call.1} parent=1 // pred_fallthru
      _
    // Predicated region
    $region6: #{tpu_custom_call.1} parent=1 // pred_check
      _
    $region7: #{tpu_custom_call.1} parent=1 // pred_check_branch
      %27 = sbr.rel (0) target = $region9
    $region8: #{tpu_custom_call.1} parent=1 // pred_region
      %29 = vsyncadd [#allocation6], 0
      %s30 = sshll.u32 %s1, 4
      %s31 = int_to_ptr.hbm [resolvable:$true] %s30
      %s32 = sshll.u32 [#allocation5], 4
      %s33 = int_to_ptr.vmem [resolvable:$true] %s32
      %38 = dma.hbm_to_vmem [thread:$0]  %s31, 2048, %s33, [#allocation6], 128, 128, 8
    $region9: #{tpu_custom_call.1} parent=1 // pred_fallthru
      _
    // Predicated region
    $region10: #{tpu_custom_call.1} parent=1 // pred_check
      _
    $region11: #{tpu_custom_call.1} parent=1 // pred_check_branch
      %40 = sbr.rel (0) target = $region13
    $region12: #{tpu_custom_call.1} parent=1 // pred_region
      _
    $region13: #{tpu_custom_call.1} parent=1 // pred_fallthru
      _
    // Predicated region
    $region14: #{tpu_custom_call.1} parent=1 // pred_check
      _
    $region15: #{tpu_custom_call.1} parent=1 // pred_check_branch
      %42 = sbr.rel (0) target = $region17
    $region16: #{tpu_custom_call.1} parent=1 // pred_region
      %44 = vsyncadd [#allocation6], 0
      %s45 = sshll.u32 %s3, 4
      %s46 = int_to_ptr.hbm [resolvable:$true] %s45
      %s47 = sshll.u32 [#allocation7], 4
      %s48 = int_to_ptr.vmem [resolvable:$true] %s47
      %53 = dma.hbm_to_vmem [thread:$0]  %s46, 2048, %s48, [#allocation6], 128, 128, 8
    $region17: #{tpu_custom_call.1} parent=1 // pred_fallthru
      _
    // Predicated region
    $region18: #{tpu_custom_call.1} parent=1 // pred_check
      _
    $region19: #{tpu_custom_call.1} parent=1 // pred_check_branch
      %55 = sbr.rel (0) target = $region21
    $region20: #{tpu_custom_call.1} parent=1 // pred_region
      _
    $region21: #{tpu_custom_call.1} parent=1 // pred_fallthru
      _
    // Predicated region
    $region22: #{tpu_custom_call.1} parent=1 // pred_check
      _
    $region23: #{tpu_custom_call.1} parent=1 // pred_check_branch
      %57 = sbr.rel (0) target = $region25
    $region24: #{tpu_custom_call.1} parent=1 // pred_region
      %59 = dma.done [#allocation3], 256
    $region25: #{tpu_custom_call.1} parent=1 // pred_fallthru
      _
    // Predicated region
    $region26: #{tpu_custom_call.1} parent=1 // pred_check
      _
    $region27: #{tpu_custom_call.1} parent=1 // pred_check_branch
      %61 = sbr.rel (0) target = $region29
    $region28: #{tpu_custom_call.1} parent=1 // pred_region
      %63 = dma.done [#allocation6], 2048
    $region29: #{tpu_custom_call.1} parent=1 // pred_fallthru
      _
    // Predicated region
    $region30: #{tpu_custom_call.1} parent=1 // pred_check
      _
    $region31: #{tpu_custom_call.1} parent=1 // pred_check_branch
      %65 = sbr.rel (0) target = $region33
    $region32: #{tpu_custom_call.1} parent=1 // pred_region
      %67 = dma.done [#allocation6], 2048
    $region33: #{tpu_custom_call.1} parent=1 // pred_fallthru
      _
    %v68 = vld [vmem:[#allocation2] sm:$0xff]
    %v69 = vld [vmem:[#allocation2 + $0x8] sm:$0xff]
    %v70 = vld [vmem:[#allocation5] sm:$0xff]
    %v71 = vld [vmem:[#allocation5 + $0x8] sm:$0xff]
    %v72 = vld [vmem:[#allocation5 + $0x10] sm:$0xff]
    %v73 = vld [vmem:[#allocation5 + $0x18] sm:$0xff]
    %v74 = vld [vmem:[#allocation5 + $0x20] sm:$0xff]
    %v75 = vld [vmem:[#allocation5 + $0x28] sm:$0xff]
    %v76 = vld [vmem:[#allocation5 + $0x30] sm:$0xff]
    %v77 = vld [vmem:[#allocation5 + $0x38] sm:$0xff]
    %v78 = vld [vmem:[#allocation5 + $0x40] sm:$0xff]
    %v79 = vld [vmem:[#allocation5 + $0x48] sm:$0xff]
    %v80 = vld [vmem:[#allocation5 + $0x50] sm:$0xff]
    %v81 = vld [vmem:[#allocation5 + $0x58] sm:$0xff]
    %v82 = vld [vmem:[#allocation5 + $0x60] sm:$0xff]
    %v83 = vld [vmem:[#allocation5 + $0x68] sm:$0xff]
    %v84 = vld [vmem:[#allocation5 + $0x70] sm:$0xff]
    %v85 = vld [vmem:[#allocation5 + $0x78] sm:$0xff]
    %v86 = vld [vmem:[%s2] sm:$0x1]
    %v88 = vperm.slane %v86, 0
    %90 = vmatpush.msra.mxu0 %v85
    %91 = vmatpush.msra.mxu0 %v84
    %92 = vmatpush.msra.mxu0 %v83
    %93 = vmatpush.msra.mxu0 %v82
    %94 = vmatpush.msra.mxu0 %v81
    %95 = vmatpush.msra.mxu0 %v80
    %96 = vmatpush.msra.mxu0 %v79
    %97 = vmatpush.msra.mxu0 %v78
    %98 = vmatpush.msra.mxu0 %v77
    %99 = vmatpush.msra.mxu0 %v76
    %100 = vmatpush.msra.mxu0 %v75
    %101 = vmatpush.msra.mxu0 %v74
    %102 = vmatpush.msra.mxu0 %v73
    %103 = vmatpush.msra.mxu0 %v72
    %104 = vmatpush.msra.mxu0 %v71
    %105 = vmatpush.msra.mxu0 %v70
    %106 = vmatmul.f32.gmra.mxu0 %v68
    %v107 = vpop.f32.mrf.mxu0
    %v108 = vadd.f32 %v88, %v107
    %109 = vmatmul.f32.gmra.mxu0 %v69
    %v110 = vpop.f32.mrf.mxu0
    %v111 = vadd.f32 %v88, %v110
    %112 = vdwg.mxu0
    %v113 = vmul.f32 %v108, 0.5
    %v114 = vmul.f32 %v111, 0.5
    %v115 = vmul.f32 %v108, 0.70710677
    %v116 = vmul.f32 %v111, 0.70710677
    %v117 = vmul.f32 %v115, %v115
    %v118 = vmin.f32 16.0, %v117
    %v119 = vmul.f32 %v118, 2.1237322e-06
    %v120 = vadd.f32 %v119, 0.00028619796
    %v121 = vmul.f32 %v118, %v120
    %v122 = vadd.f32 %v121, 0.0036580483
    %v123 = vmul.f32 %v118, %v122
    %v124 = vadd.f32 %v123, 0.05243302
    %v125 = vmul.f32 %v118, %v124
    %v126 = vadd.f32 %v125, 0.18741608
    %v127 = vmul.f32 %v118, %v126
    %v128 = vadd.f32 %v127, 1.1283791
    %v129 = vmul.f32 %v115, %v128
    %v130 = vmul.f32 %v118, 3.8918573e-05
    %v131 = vadd.f32 %v130, 0.001143296
    %v132 = vmul.f32 %v118, %v131
    %v133 = vadd.f32 %v132, 0.014752088
    %v134 = vmul.f32 %v118, %v133
    %v135 = vadd.f32 %v134, 0.112945676
    %v136 = vmul.f32 %v118, %v135
    %v137 = vadd.f32 %v136, 0.4994258
    %v138 = vmul.f32 %v118, %v137
    %v139 = vadd.f32 %v138, 1.0
    %v140 = vrcp.pop %v139
    %v141 = vmul.f32 %v139, %v140
    %v142 = vsub.f32 1.0, %v141
    %v143 = vmul.f32 %v140, %v142
    %v144 = vadd.f32 %v140, %v143
    %vm145 = vweird.f32 %v139
    %vm146 = vweird.f32 %v140
    %vm147 = vmor %vm145, %vm146
    %v148 = vsel %vm147, %v140, %v144
    %v149 = vand.u32 2147483647, %v139
    %vm150 = vcmp.eq.f32.partialorder %v149, 8.507059e+37
    %v151 = vand.u32 %v139, 2147483648
    %v152 = vor.u32 1.1754944e-38, %v151
    %v153 = vsel %vm150, %v152, %v148
    %v154 = vmul.f32 %v129, %v153
    %v155 = vmin.f32 %v154, 1.0
    %v156 = vmax.f32 %v155, -1.0
    %v157 = vmul.f32 %v116, %v116
    %v158 = vmin.f32 16.0, %v157
    %v159 = vmul.f32 %v158, 2.1237322e-06
    %v160 = vadd.f32 %v159, 0.00028619796
    %v161 = vmul.f32 %v158, %v160
    %v162 = vadd.f32 %v161, 0.0036580483
    %v163 = vmul.f32 %v158, %v162
    %v164 = vadd.f32 %v163, 0.05243302
    %v165 = vmul.f32 %v158, %v164
    %v166 = vadd.f32 %v165, 0.18741608
    %v167 = vmul.f32 %v158, %v166
    %v168 = vadd.f32 %v167, 1.1283791
    %v169 = vmul.f32 %v116, %v168
    %v170 = vmul.f32 %v158, 3.8918573e-05
    %v171 = vadd.f32 %v170, 0.001143296
    %v172 = vmul.f32 %v158, %v171
    %v173 = vadd.f32 %v172, 0.014752088
    %v174 = vmul.f32 %v158, %v173
    %v175 = vadd.f32 %v174, 0.112945676
    %v176 = vmul.f32 %v158, %v175
    %v177 = vadd.f32 %v176, 0.4994258
    %v178 = vmul.f32 %v158, %v177
    %v179 = vadd.f32 %v178, 1.0
    %v180 = vrcp.pop %v179
    %v181 = vmul.f32 %v179, %v180
    %v182 = vsub.f32 1.0, %v181
    %v183 = vmul.f32 %v180, %v182
    %v184 = vadd.f32 %v180, %v183
    %vm185 = vweird.f32 %v179
    %vm186 = vweird.f32 %v180
    %vm187 = vmor %vm185, %vm186
    %v188 = vsel %vm187, %v180, %v184
    %v189 = vand.u32 2147483647, %v179
    %vm190 = vcmp.eq.f32.partialorder %v189, 8.507059e+37
    %v191 = vand.u32 %v179, 2147483648
    %v192 = vor.u32 1.1754944e-38, %v191
    %v193 = vsel %vm190, %v192, %v188
    %v194 = vmul.f32 %v169, %v193
    %v195 = vmin.f32 %v194, 1.0
    %v196 = vmax.f32 %v195, -1.0
    %v197 = vadd.f32 %v156, 1.0
    %v198 = vadd.f32 %v196, 1.0
    %v199 = vmul.f32 %v113, %v197
    %v200 = vmul.f32 %v114, %v198
    %v201 = vld [vmem:[#allocation7] sm:$0xff]
    %v202 = vld [vmem:[#allocation7 + $0x8] sm:$0xff]
    %v203 = vld [vmem:[#allocation7 + $0x10] sm:$0xff]
    %v204 = vld [vmem:[#allocation7 + $0x18] sm:$0xff]
    %v205 = vld [vmem:[#allocation7 + $0x20] sm:$0xff]
    %v206 = vld [vmem:[#allocation7 + $0x28] sm:$0xff]
    %v207 = vld [vmem:[#allocation7 + $0x30] sm:$0xff]
    %v208 = vld [vmem:[#allocation7 + $0x38] sm:$0xff]
    %v209 = vld [vmem:[#allocation7 + $0x40] sm:$0xff]
    %v210 = vld [vmem:[#allocation7 + $0x48] sm:$0xff]
    %v211 = vld [vmem:[#allocation7 + $0x50] sm:$0xff]
    %v212 = vld [vmem:[#allocation7 + $0x58] sm:$0xff]
    %v213 = vld [vmem:[#allocation7 + $0x60] sm:$0xff]
    %v214 = vld [vmem:[#allocation7 + $0x68] sm:$0xff]
    %v215 = vld [vmem:[#allocation7 + $0x70] sm:$0xff]
    %v216 = vld [vmem:[#allocation7 + $0x78] sm:$0xff]
    %v217 = vld [vmem:[%s4] sm:$0x1]
    %v219 = vperm.slane %v217, 0
    %221 = vmatpush.msra.mxu0 %v216
    %222 = vmatpush.msra.mxu0 %v215
    %223 = vmatpush.msra.mxu0 %v214
    %224 = vmatpush.msra.mxu0 %v213
    %225 = vmatpush.msra.mxu0 %v212
    %226 = vmatpush.msra.mxu0 %v211
    %227 = vmatpush.msra.mxu0 %v210
    %228 = vmatpush.msra.mxu0 %v209
    %229 = vmatpush.msra.mxu0 %v208
    %230 = vmatpush.msra.mxu0 %v207
    %231 = vmatpush.msra.mxu0 %v206
    %232 = vmatpush.msra.mxu0 %v205
    %233 = vmatpush.msra.mxu0 %v204
    %234 = vmatpush.msra.mxu0 %v203
    %235 = vmatpush.msra.mxu0 %v202
    %236 = vmatpush.msra.mxu0 %v201
    %237 = vmatmul.f32.gmra.mxu0 %v199
    %v238 = vpop.f32.mrf.mxu0
    %v239 = vadd.f32 %v219, %v238
    %240 = vmatmul.f32.gmra.mxu0 %v200
    %v241 = vpop.f32.mrf.mxu0
    %v242 = vadd.f32 %v219, %v241
    %243 = vdwg.mxu0
    %244 = vst [vmem:[#allocation8] sm:$0xff] %v239
    %245 = vst [vmem:[#allocation8 + $0x8] sm:$0xff] %v242
    // Predicated region
    $region34: #{tpu_custom_call.1} parent=1 // pred_check
      _
    $region35: #{tpu_custom_call.1} parent=1 // pred_check_branch
      %247 = sbr.rel (0) target = $region37
    $region36: #{tpu_custom_call.1} parent=1 // pred_region
      %249 = vsyncadd [#allocation4], 0
      %s250 = sshll.u32 [#allocation8], 4
      %s251 = int_to_ptr.vmem [resolvable:$true] %s250
      %s252 = sshll.u32 %s5, 4
      %s253 = int_to_ptr.hbm [resolvable:$true] %s252
      %258 = dma.vmem_to_hbm [thread:$0]  %s251, 256, %s253, [#allocation4], 128, 128, 8
    $region37: #{tpu_custom_call.1} parent=1 // pred_fallthru
      _
    // Predicated region
    $region38: #{tpu_custom_call.1} parent=1 // pred_check
      _
    $region39: #{tpu_custom_call.1} parent=1 // pred_check_branch
      %260 = sbr.rel (0) target = $region41
    $region40: #{tpu_custom_call.1} parent=1 // pred_region
      %262 = dma.done [#allocation4], 256
    $region41: #{tpu_custom_call.1} parent=1 // pred_fallthru
      _
    %263 = vsyncpa [#allocation3], 1
    %264 = vsyncpa [#allocation6], 1
    %265 = vsyncpa [#allocation4], 1

</llo_original>
